<compile_context>
chip_gen: v7x
topology: tpu7x:2x2x1
jax: 0.10.0
libtpu: 0.0.40
codegen_flags: <defaults>
</compile_context>

<pallas_src>
import jax
import jax.numpy as jnp
from jax.experimental import pallas as pl
from jax.experimental.pallas import tpu as pltpu


_LANE = 128
_MXU_MIN_C = 128           # below this, the contraction runs on the VPU/XLU
_SMALL_MAX_LANES = 65536   # pixel-tile cap for the small-C (VPU) path
_MXU_MAX_LANES = 32768     # pixel-tile cap for the MXU path (budget shrinks on v7x)
_TINY_TOTAL_PIXELS = 8192  # below this, collapse the whole problem to 1 step


def _vmem_limit_bytes():
    """Generation-aware scoped-VMEM limit: half of physical capacity.

    v5e/v6e (128 MiB) -> 64 MiB, v7x (64 MiB) -> 32 MiB.  Falls back to the
    most conservative value if the query is unavailable."""
    try:
        cap = int(pltpu.get_tpu_info().vmem_capacity_bytes)
    except Exception:
        cap = 64 << 20
    return int(min(cap // 2, 64 << 20))


def _round_lanes_down(n):
    return max(_LANE, (int(n) // _LANE) * _LANE)


def _contract_small(x_f32, wt_f32, cout):
    """(Cout, L) = wt^T @ x for tiny channel counts, without the MXU.

    x_f32: (C, L) f32, wt_f32: (C, Cout) f32.  The multiply runs on full
    (C, L) vregs (VPU); the cross-sublane reduce goes to the XLU slot."""
    rows = [jnp.sum(x_f32 * wt_f32[:, o:o + 1], axis=0, keepdims=True)
            for o in range(cout)]
    return jnp.concatenate(rows, axis=0)            # (Cout, L)


# --- tiled kernels: one (1, C, THW) pixel tile per grid step ----------------

def _small_tile_kernel_factory(cout):
    def kernel(x_ref, wt_ref, b_ref, o_ref):
        x = x_ref[0].astype(jnp.float32)            # (C, THW)
        wt = wt_ref[...]                            # (C, Cout), VMEM-resident
        out = _contract_small(x, wt, cout) + b_ref[...]
        o_ref[0] = out.astype(o_ref.dtype)          # single (Cout, THW) store
    return kernel


def _mxu_tile_kernel(x_ref, w_ref, b_ref, o_ref):
    out = jnp.dot(w_ref[...], x_ref[0],
                  preferred_element_type=jnp.float32) + b_ref[...]
    o_ref[0] = out.astype(o_ref.dtype)


# --- single-step kernels for tiny problems (whole arrays in one shot) -------

def _small_whole_kernel_factory(n_batch, cout):
    def kernel(x_ref, wt_ref, b_ref, o_ref):
        wt = wt_ref[...]                            # (C, Cout)
        b = b_ref[...]                              # (Cout, 1)
        for n in range(n_batch):                    # static unroll, tiny N
            x = x_ref[n].astype(jnp.float32)        # (C, HW)
            o_ref[n] = (_contract_small(x, wt, cout) + b).astype(o_ref.dtype)
    return kernel


def _mxu_whole_kernel_factory(n_batch):
    def kernel(x_ref, w_ref, b_ref, o_ref):
        w = w_ref[...]                              # (Cout, C)
        b = b_ref[...]                              # (Cout, 1)
        for n in range(n_batch):
            out = jnp.dot(w, x_ref[n], preferred_element_type=jnp.float32) + b
            o_ref[n] = out.astype(o_ref.dtype)
    return kernel


def predict_head_conv(x_nchw, weight, bias, *,
                      max_tile_lanes=None, allow_fused_tiny=True):
    """PredictHead('Conv', fpn='None') forward: 1x1 Conv2d (C -> Cout).

    x (N, C, H, W), weight (Cout, C, 1, 1), bias (Cout,)."""
    N, C, H, W = x_nchw.shape
    Cout = weight.shape[0]
    HW = H * W
    itemsize = jnp.dtype(x_nchw.dtype).itemsize

    x_flat = x_nchw.reshape(N, C, HW)
    w2d = weight.reshape(Cout, C).astype(jnp.float32)
    b_col = bias.reshape(Cout, 1).astype(jnp.float32)

    use_mxu = C >= _MXU_MIN_C
    vmem_limit = _vmem_limit_bytes()
    tile_budget = vmem_limit // 2              # headroom for compiler scratch
    # Double-buffered input + output bytes per pixel (lane).
    bytes_per_lane = 2 * (C + Cout) * itemsize
    cap = _MXU_MAX_LANES if use_mxu else _SMALL_MAX_LANES
    if max_tile_lanes is not None:
        cap = min(cap, int(max_tile_lanes))
    max_lanes = min(cap, _round_lanes_down(tile_budget // bytes_per_lane))

    cost = pl.CostEstimate(
        flops=2 * N * Cout * C * HW,
        transcendentals=0,
        bytes_accessed=(N * C * HW + N * Cout * HW) * itemsize
        + (Cout * C + Cout) * 4,
    )
    out_shape = jax.ShapeDtypeStruct((N, Cout, HW), x_nchw.dtype)

    # --- tiny problems: one fused grid step, fixed overhead paid once -------
    whole_bytes = N * (C + Cout) * HW * itemsize
    if (allow_fused_tiny and N * HW <= _TINY_TOTAL_PIXELS
            and 2 * whole_bytes <= tile_budget):
        if use_mxu:
            kernel = _mxu_whole_kernel_factory(N)
            w_arg, w_blk = w2d, (Cout, C)
        else:
            kernel = _small_whole_kernel_factory(N, Cout)
            w_arg, w_blk = w2d.T, (C, Cout)
        out_flat = pl.pallas_call(
            kernel,
            out_shape=out_shape,
            grid=(1,),
            in_specs=[
                pl.BlockSpec((N, C, HW), lambda i: (0, 0, 0)),
                pl.BlockSpec(w_blk, lambda i: (0, 0)),
                pl.BlockSpec((Cout, 1), lambda i: (0, 0)),
            ],
            out_specs=pl.BlockSpec((N, Cout, HW), lambda i: (0, 0, 0)),
            compiler_params=pltpu.CompilerParams(vmem_limit_bytes=vmem_limit),
            cost_estimate=cost,
        )(x_flat, w_arg, b_col)
        return out_flat.reshape(N, Cout, H, W)

    # --- tiled path: grid = (N, ceil(HW/THW)); no host pad / output slice ---
    if HW <= max_lanes:
        thw = HW
        # v7x has 2 TensorCores: if the batch axis gives no parallelism and
        # the single tile is large, split the pixel axis so both cores get
        # roofline-sized work (harmless on single-TC v5e/v6e).
        if N == 1 and HW >= 2 * 8 * 1024:
            thw = (((HW + 1) // 2 + _LANE - 1) // _LANE) * _LANE
    else:
        thw = max_lanes                         # multiple of 128
    n_tiles = pl.cdiv(HW, thw)                  # ragged last tile handled by Pallas

    if use_mxu:
        kernel = _mxu_tile_kernel
        w_arg, w_blk = w2d, (Cout, C)
    else:
        kernel = _small_tile_kernel_factory(Cout)
        w_arg, w_blk = w2d.T, (C, Cout)

    out_flat = pl.pallas_call(
        kernel,
        out_shape=out_shape,
        grid=(N, n_tiles),
        in_specs=[
            pl.BlockSpec((1, C, thw), lambda n, t: (n, 0, t)),
            pl.BlockSpec(w_blk, lambda n, t: (0, 0)),       # resident weight
            pl.BlockSpec((Cout, 1), lambda n, t: (0, 0)),   # resident bias
        ],
        out_specs=pl.BlockSpec((1, Cout, thw), lambda n, t: (n, 0, t)),
        compiler_params=pltpu.CompilerParams(
            dimension_semantics=("parallel", "parallel"),
            vmem_limit_bytes=vmem_limit,
        ),
        cost_estimate=cost,
    )(x_flat, w_arg, b_col)
    return out_flat.reshape(N, Cout, H, W)


def _ref_conv1x1(x, w, b):
    w2 = w.reshape(w.shape[0], w.shape[1])
    return (jnp.einsum("nchw,oc->nohw", x, w2,
                       precision=jax.lax.Precision.HIGHEST)
            + b.reshape(1, -1, 1, 1))


if __name__ == "__main__":
    key = jax.random.PRNGKey(0)

    def make(k, n, c, h, w, cout):
        kx, kw, kb = jax.random.split(k, 3)
        bound = 1.0 / (c ** 0.5)     # Conv2d kaiming-uniform bound, fan_in=c*1*1
        x = jax.random.normal(kx, (n, c, h, w), dtype=jnp.float32)
        weight = jax.random.uniform(kw, (cout, c, 1, 1), jnp.float32,
                                    -bound, bound)
        bias = jax.random.uniform(kb, (cout,), jnp.float32, -bound, bound)
        return x, weight, bias

    k1, k2, k3, k4 = jax.random.split(key, 4)

    # 1) Module-consistent small shapes (C=4 -> 2): fused tiny VPU path.
    x, w, b = make(k1, 2, 4, 16, 16, 2)
    out = jax.block_until_ready(predict_head_conv(x, w, b))
    assert out.shape == (2, 2, 16, 16), out.shape
    assert jnp.allclose(out, _ref_conv1x1(x, w, b), atol=1e-5, rtol=1e-5), \
        "tiny VPU path mismatch"

    # 2) Larger channel count: fused tiny MXU path (bf16-pass matmul on MXU
    #    -> loose tolerance vs HIGHEST-precision f32 reference).
    x, w, b = make(k2, 2, 128, 16, 16, 2)
    out = jax.block_until_ready(predict_head_conv(x, w, b))
    assert out.shape == (2, 2, 16, 16), out.shape
    assert jnp.allclose(out, _ref_conv1x1(x, w, b), atol=2e-2, rtol=2e-2), \
        "tiny MXU path mismatch"

    # 3) Tiled VPU path with a ragged last pixel tile (HW=300, THW=128).
    x, w, b = make(k3, 2, 4, 10, 30, 2)
    out = jax.block_until_ready(
        predict_head_conv(x, w, b, max_tile_lanes=128, allow_fused_tiny=False))
    assert out.shape == (2, 2, 10, 30), out.shape
    assert jnp.allclose(out, _ref_conv1x1(x, w, b), atol=1e-5, rtol=1e-5), \
        "tiled VPU (ragged) path mismatch"

    # 4) Tiled MXU path with a ragged last pixel tile.
    x, w, b = make(k4, 2, 128, 10, 30, 2)
    out = jax.block_until_ready(
        predict_head_conv(x, w, b, max_tile_lanes=128, allow_fused_tiny=False))
    assert out.shape == (2, 2, 10, 30), out.shape
    assert jnp.allclose(out, _ref_conv1x1(x, w, b), atol=2e-2, rtol=2e-2), \
        "tiled MXU (ragged) path mismatch"

    print("KERNEL_OK")
</pallas_src>

<mosaic_0001>
module attributes {stable_mosaic.version = 11 : i64} {
  func.func @kernel(%arg0: i32, %arg1: memref<2x4x256xf32, #tpu.memory_space<vmem>>, %arg2: memref<4x2xf32, #tpu.memory_space<vmem>>, %arg3: memref<2x1xf32, #tpu.memory_space<vmem>>, %arg4: memref<2x2x256xf32, #tpu.memory_space<vmem>>) attributes {dimension_semantics = [#tpu.dimension_semantics<arbitrary>], iteration_bounds = array<i64: 1>, scalar_prefetch = 0 : i64, scratch_operands = 0 : i64, tpu.core_type = #tpu.core_type<tc>, window_params = [{pipeline_mode = #tpu.pipeline_mode<synchronous>, transform_indices = @transform_0, window_bounds = array<i64: 2, 4, 256>}, {pipeline_mode = #tpu.pipeline_mode<synchronous>, transform_indices = @transform_1, window_bounds = array<i64: 4, 2>}, {pipeline_mode = #tpu.pipeline_mode<synchronous>, transform_indices = @transform_2, window_bounds = array<i64: 2, 1>}, {pipeline_mode = #tpu.pipeline_mode<synchronous>, transform_indices = @transform_3, window_bounds = array<i64: 2, 2, 256>}]} {
    %c0 = arith.constant 0 : index
    %c0_0 = arith.constant 0 : index
    %0 = vector.load %arg2[%c0, %c0_0] : memref<4x2xf32, #tpu.memory_space<vmem>>, vector<4x2xf32>
    %c0_1 = arith.constant 0 : index
    %c0_2 = arith.constant 0 : index
    %1 = vector.load %arg3[%c0_1, %c0_2] : memref<2x1xf32, #tpu.memory_space<vmem>>, vector<2x1xf32>
    %c0_3 = arith.constant 0 : index
    %c0_4 = arith.constant 0 : index
    %c0_5 = arith.constant 0 : index
    %2 = vector.load %arg1[%c0_3, %c0_4, %c0_5] : memref<2x4x256xf32, #tpu.memory_space<vmem>>, vector<1x4x256xf32>
    %3 = vector.shape_cast %2 : vector<1x4x256xf32> to vector<4x256xf32>
    %4 = vector.extract_strided_slice %0 {offsets = [0, 0], sizes = [4, 1], strides = [1, 1]} : vector<4x2xf32> to vector<4x1xf32>
    %5 = vector.broadcast %4 : vector<4x1xf32> to vector<4x256xf32>
    %6 = arith.mulf %3, %5 : vector<4x256xf32>
    %cst = arith.constant dense<0.000000e+00> : vector<256xf32>
    %7 = vector.multi_reduction <add>, %6, %cst [0] : vector<4x256xf32> to vector<256xf32>
    %8 = vector.shape_cast %7 : vector<256xf32> to vector<1x256xf32>
    %9 = vector.extract_strided_slice %0 {offsets = [0, 1], sizes = [4, 1], strides = [1, 1]} : vector<4x2xf32> to vector<4x1xf32>
    %10 = vector.broadcast %9 : vector<4x1xf32> to vector<4x256xf32>
    %11 = arith.mulf %3, %10 : vector<4x256xf32>
    %cst_6 = arith.constant dense<0.000000e+00> : vector<256xf32>
    %12 = vector.multi_reduction <add>, %11, %cst_6 [0] : vector<4x256xf32> to vector<256xf32>
    %13 = vector.shape_cast %12 : vector<256xf32> to vector<1x256xf32>
    %14 = tpu.concatenate %8, %13 in 0 : vector<1x256xf32>, vector<1x256xf32> -> vector<2x256xf32>
    %15 = vector.broadcast %1 : vector<2x1xf32> to vector<2x256xf32>
    %16 = arith.addf %14, %15 : vector<2x256xf32>
    %c0_7 = arith.constant 0 : index
    %c0_8 = arith.constant 0 : index
    %c0_9 = arith.constant 0 : index
    %17 = vector.load %arg4[%c0_7, %c0_8, %c0_9] : memref<2x2x256xf32, #tpu.memory_space<vmem>>, vector<1x2x256xf32>
    %18 = vector.shape_cast %17 : vector<1x2x256xf32> to vector<2x256xf32>
    %19 = vector.shape_cast %16 : vector<2x256xf32> to vector<1x2x256xf32>
    tpu.vector_store %arg4[%c0_7, %c0_8, %c0_9], %19 {strides = array<i32>} : memref<2x2x256xf32, #tpu.memory_space<vmem>>, vector<1x2x256xf32>,
    %c1 = arith.constant 1 : index
    %c0_10 = arith.constant 0 : index
    %c0_11 = arith.constant 0 : index
    %20 = vector.load %arg1[%c1, %c0_10, %c0_11] : memref<2x4x256xf32, #tpu.memory_space<vmem>>, vector<1x4x256xf32>
    %21 = vector.shape_cast %20 : vector<1x4x256xf32> to vector<4x256xf32>
    %22 = vector.extract_strided_slice %0 {offsets = [0, 0], sizes = [4, 1], strides = [1, 1]} : vector<4x2xf32> to vector<4x1xf32>
    %23 = vector.broadcast %22 : vector<4x1xf32> to vector<4x256xf32>
    %24 = arith.mulf %21, %23 : vector<4x256xf32>
    %cst_12 = arith.constant dense<0.000000e+00> : vector<256xf32>
    %25 = vector.multi_reduction <add>, %24, %cst_12 [0] : vector<4x256xf32> to vector<256xf32>
    %26 = vector.shape_cast %25 : vector<256xf32> to vector<1x256xf32>
    %27 = vector.extract_strided_slice %0 {offsets = [0, 1], sizes = [4, 1], strides = [1, 1]} : vector<4x2xf32> to vector<4x1xf32>
    %28 = vector.broadcast %27 : vector<4x1xf32> to vector<4x256xf32>
    %29 = arith.mulf %21, %28 : vector<4x256xf32>
    %cst_13 = arith.constant dense<0.000000e+00> : vector<256xf32>
    %30 = vector.multi_reduction <add>, %29, %cst_13 [0] : vector<4x256xf32> to vector<256xf32>
    %31 = vector.shape_cast %30 : vector<256xf32> to vector<1x256xf32>
    %32 = tpu.concatenate %26, %31 in 0 : vector<1x256xf32>, vector<1x256xf32> -> vector<2x256xf32>
    %33 = vector.broadcast %1 : vector<2x1xf32> to vector<2x256xf32>
    %34 = arith.addf %32, %33 : vector<2x256xf32>
    %c1_14 = arith.constant 1 : index
    %c0_15 = arith.constant 0 : index
    %c0_16 = arith.constant 0 : index
    %35 = vector.load %arg4[%c1_14, %c0_15, %c0_16] : memref<2x2x256xf32, #tpu.memory_space<vmem>>, vector<1x2x256xf32>
    %36 = vector.shape_cast %35 : vector<1x2x256xf32> to vector<2x256xf32>
    %37 = vector.shape_cast %34 : vector<2x256xf32> to vector<1x2x256xf32>
    tpu.vector_store %arg4[%c1_14, %c0_15, %c0_16], %37 {strides = array<i32>} : memref<2x2x256xf32, #tpu.memory_space<vmem>>, vector<1x2x256xf32>,
    return
  }
  func.func @transform_0(%arg0: i32) -> (i32, i32, i32) {
    %c0_i32 = arith.constant 0 : i32
    %c0_i32_0 = arith.constant 0 : i32
    %c0_i32_1 = arith.constant 0 : i32
    %c0_i32_2 = arith.constant 0 : i32
    return %c0_i32, %c0_i32_0, %c0_i32_1 : i32, i32, i32
  }
  func.func @transform_1(%arg0: i32) -> (i32, i32) {
    %c0_i32 = arith.constant 0 : i32
    %c0_i32_0 = arith.constant 0 : i32
    %c0_i32_1 = arith.constant 0 : i32
    return %c0_i32, %c0_i32_0 : i32, i32
  }
  func.func @transform_2(%arg0: i32) -> (i32, i32) {
    %c0_i32 = arith.constant 0 : i32
    %c0_i32_0 = arith.constant 0 : i32
    %c0_i32_1 = arith.constant 0 : i32
    return %c0_i32, %c0_i32_0 : i32, i32
  }
  func.func @transform_3(%arg0: i32) -> (i32, i32, i32) {
    %c0_i32 = arith.constant 0 : i32
    %c0_i32_0 = arith.constant 0 : i32
    %c0_i32_1 = arith.constant 0 : i32
    %c0_i32_2 = arith.constant 0 : i32
    return %c0_i32, %c0_i32_0, %c0_i32_1 : i32, i32, i32
  }
}

</mosaic_0001>

<llo_original>
// kernel: tpu_custom_call.1
$region0: #{tpu_custom_call.1}
  #allocation0 [shape = 'u32[]', space=smem, size = 0x4, offset = 0x4, fixed_abs, tag = 'smem constant byte address 0x4 - core index']
  #allocation1 [shape = 'u32[144,128]{1,0:T(1,128)}', space=vmem, size = 0x12000, scoped, tag = 'internal scratch']
  %s0 = inlined_call_operand.hbm [shape: f32[2,4,256], index: 0, kind: input, shape index: {}]
  %s1 = inlined_call_operand.vmem [shape: f32[4,2], index: 1, kind: input, shape index: {}]
  %s2 = inlined_call_operand.vmem [shape: f32[2,1], index: 2, kind: input, shape index: {}]
  %s3 = inlined_call_operand.hbm [shape: f32[2,2,256], index: 3, kind: output, shape index: {}]
  %s4 = sld [smem:[#allocation0]]
  $region26: #{tpu_custom_call.1} parent=0
    _
  %s6 = ssub.s32 1, %s4
  %s7 = scalar_select 0, %s6, %s4
  $region1: #{tpu_custom_call.1} parent=0
    #allocation2 [shape = 'u8[8192]{0}', space=vmem, size = 0x2000, scoped, tag = 'input window, operand 0, single buffered']
    #allocation3 [shape = 's32[1]{0}', space=sflag, size = 0x4, scoped, tag = 'scoped memory for tpu_custom_call.1']
    #allocation4 [shape = 's32[1]{0}', space=sflag, size = 0x4, scoped, tag = 'scoped memory for tpu_custom_call.1']
    #allocation5 [shape = 'u8[4096]{0}', space=vmem, size = 0x1000, scoped, tag = 'output window, operand 0, single buffered']
    %8 = vsyncpa [#allocation3], 0
    %9 = vsyncpa [#allocation4], 0
    // Predicated region
    $region2: #{tpu_custom_call.1} parent=1 // pred_check
      _
    $region3: #{tpu_custom_call.1} parent=1 // pred_check_branch
      %11 = sbr.rel (0) target = $region5
    $region4: #{tpu_custom_call.1} parent=1 // pred_region
      %s13 = ssub.s32 256, 256
      %14 = vsyncadd [#allocation3], %s13
      %s15 = sshll.u32 [#allocation2], 4
      %s16 = int_to_ptr.vmem [resolvable:$true] %s15
      %21 = dma.hbm_to_vmem [thread:$0]  %s0, 256, %s16, [#allocation3], 128, 128, 8
    $region5: #{tpu_custom_call.1} parent=1 // pred_fallthru
      _
    // Predicated region
    $region6: #{tpu_custom_call.1} parent=1 // pred_check
      _
    $region7: #{tpu_custom_call.1} parent=1 // pred_check_branch
      %23 = sbr.rel (0) target = $region9
    $region8: #{tpu_custom_call.1} parent=1 // pred_region
      _
    $region9: #{tpu_custom_call.1} parent=1 // pred_fallthru
      _
    // Predicated region
    $region10: #{tpu_custom_call.1} parent=1 // pred_check
      _
    $region11: #{tpu_custom_call.1} parent=1 // pred_check_branch
      %25 = sbr.rel (0) target = $region13
    $region12: #{tpu_custom_call.1} parent=1 // pred_region
      _
    $region13: #{tpu_custom_call.1} parent=1 // pred_fallthru
      _
    // Predicated region
    $region14: #{tpu_custom_call.1} parent=1 // pred_check
      _
    $region15: #{tpu_custom_call.1} parent=1 // pred_check_branch
      %27 = sbr.rel (0) target = $region17
    $region16: #{tpu_custom_call.1} parent=1 // pred_region
      %28 = dma.done [#allocation3], 256
    $region17: #{tpu_custom_call.1} parent=1 // pred_fallthru
      _
    %v29 = vld [vmem:[%s1] sm:$0xf]
    %v30 = vld [vmem:[%s2] sm:$0x3]
    %v31 = vld [vmem:[#allocation2] sm:$0xff]
    %33 = vset.pattern.permute.xlu0 0
    %34 = vperm.xlu0 %33, %v29
    %v35 = vpop.permute.xlu0 %34
    %v37 = vunpack.c.l.s4 839922192
    %v38 = vunpack.c.0.s8 %v37
    %v39 = vlaneseq
    %v40 = vshrl.u32 %v39, 7
    %v41 = vsub.s32 %v38, %v40
    %v42 = vrot.slane %v35, %v41
    %v44 = vmul.f32 %v31, %v42
    %v46 = vcombine.high %v44, %v44
    %vm48 = vcmask 1043456
    %v49 = vsel %vm48, %v44, 0.0
    %v50 = vrot.slane %v49, 4
    %v51 = vadd.f32 %v49, %v50
    %v52 = vrot.slane %v51, 2
    %v53 = vadd.f32 %v51, %v52
    %v54 = vrot.slane %v53, 1
    %v55 = vadd.f32 %v53, %v54
    %v56 = vsel %vm48, %v46, 0.0
    %v57 = vrot.slane %v56, 4
    %v58 = vadd.f32 %v56, %v57
    %v59 = vrot.slane %v58, 2
    %v60 = vadd.f32 %v58, %v59
    %v61 = vrot.slane %v60, 1
    %v62 = vadd.f32 %v60, %v61
    %63 = vset.pattern.permute.xlu0 1
    %64 = vperm.xlu0 %63, %v29
    %v65 = vpop.permute.xlu0 %64
    %v67 = vunpack.c.l.s4 839922192
    %v68 = vunpack.c.0.s8 %v67
    %v69 = vlaneseq
    %v70 = vshrl.u32 %v69, 7
    %v71 = vsub.s32 %v68, %v70
    %v72 = vrot.slane %v65, %v71
    %v74 = vmul.f32 %v31, %v72
    %v76 = vcombine.high %v74, %v74
    %v78 = vsel %vm48, %v74, 0.0
    %v79 = vrot.slane %v78, 4
    %v80 = vadd.f32 %v78, %v79
    %v81 = vrot.slane %v80, 2
    %v82 = vadd.f32 %v80, %v81
    %v83 = vrot.slane %v82, 1
    %v84 = vadd.f32 %v82, %v83
    %v85 = vsel %vm48, %v76, 0.0
    %v86 = vrot.slane %v85, 4
    %v87 = vadd.f32 %v85, %v86
    %v88 = vrot.slane %v87, 2
    %v89 = vadd.f32 %v87, %v88
    %v90 = vrot.slane %v89, 1
    %v91 = vadd.f32 %v89, %v90
    %vm92 = vcmask 1040384
    %v93 = vsel %vm92, %v55, %v84
    %v94 = vsel %vm92, %v62, %v91
    %96 = vset.pattern.permute.xlu0 0
    %97 = vperm.xlu0 %96, %v30
    %v98 = vpop.permute.xlu0 %97
    %v100 = vadd.f32 %v93, %v98
    %v101 = vadd.f32 %v94, %v98
    %v104 = vcombine.low %v100, %v101
    %v106 = vunpack.c.l.s4 1983009808
    %v107 = vunpack.c.0.s8 %v106
    %v108 = vlaneseq
    %v109 = vshrl.u32 %v108, 7
    %v110 = vsub.s32 %v107, %v109
    %v111 = vrot.slane %v104, %v110
    %113 = vst [vmem:[#allocation5] sm:$0xf] %v111
    %s114 = scalar_lea.vmem [#allocation2], 8
    %v115 = vld [vmem:[%s114] sm:$0xff]
    %v116 = vmul.f32 %v115, %v42
    %v118 = vcombine.high %v116, %v116
    %v120 = vsel %vm48, %v116, 0.0
    %v121 = vrot.slane %v120, 4
    %v122 = vadd.f32 %v120, %v121
    %v123 = vrot.slane %v122, 2
    %v124 = vadd.f32 %v122, %v123
    %v125 = vrot.slane %v124, 1
    %v126 = vadd.f32 %v124, %v125
    %v127 = vsel %vm48, %v118, 0.0
    %v128 = vrot.slane %v127, 4
    %v129 = vadd.f32 %v127, %v128
    %v130 = vrot.slane %v129, 2
    %v131 = vadd.f32 %v129, %v130
    %v132 = vrot.slane %v131, 1
    %v133 = vadd.f32 %v131, %v132
    %v134 = vmul.f32 %v115, %v72
    %v136 = vcombine.high %v134, %v134
    %v138 = vsel %vm48, %v134, 0.0
    %v139 = vrot.slane %v138, 4
    %v140 = vadd.f32 %v138, %v139
    %v141 = vrot.slane %v140, 2
    %v142 = vadd.f32 %v140, %v141
    %v143 = vrot.slane %v142, 1
    %v144 = vadd.f32 %v142, %v143
    %v145 = vsel %vm48, %v136, 0.0
    %v146 = vrot.slane %v145, 4
    %v147 = vadd.f32 %v145, %v146
    %v148 = vrot.slane %v147, 2
    %v149 = vadd.f32 %v147, %v148
    %v150 = vrot.slane %v149, 1
    %v151 = vadd.f32 %v149, %v150
    %v152 = vsel %vm92, %v126, %v144
    %v153 = vsel %vm92, %v133, %v151
    %v154 = vadd.f32 %v152, %v98
    %v155 = vadd.f32 %v153, %v98
    %v158 = vcombine.low %v154, %v155
    %v160 = vunpack.c.l.s4 1983009808
    %v161 = vunpack.c.0.s8 %v160
    %v162 = vlaneseq
    %v163 = vshrl.u32 %v162, 7
    %v164 = vsub.s32 %v161, %v163
    %v165 = vrot.slane %v158, %v164
    %s167 = scalar_lea.vmem [#allocation5], 4
    %168 = vst [vmem:[%s167] sm:$0xf] %v165
    // Predicated region
    $region18: #{tpu_custom_call.1} parent=1 // pred_check
      _
    $region19: #{tpu_custom_call.1} parent=1 // pred_check_branch
      %170 = sbr.rel (0) target = $region21
    $region20: #{tpu_custom_call.1} parent=1 // pred_region
      %s172 = ssub.s32 128, 128
      %173 = vsyncadd [#allocation4], %s172
      %s174 = sshll.u32 [#allocation5], 4
      %s175 = int_to_ptr.vmem [resolvable:$true] %s174
      %180 = dma.vmem_to_hbm [thread:$0]  %s175, 128, %s3, [#allocation4], 64, 64, 4
    $region21: #{tpu_custom_call.1} parent=1 // pred_fallthru
      _
    // Predicated region
    $region22: #{tpu_custom_call.1} parent=1 // pred_check
      _
    $region23: #{tpu_custom_call.1} parent=1 // pred_check_branch
      %182 = sbr.rel (0) target = $region25
    $region24: #{tpu_custom_call.1} parent=1 // pred_region
      %183 = dma.done [#allocation4], 128
    $region25: #{tpu_custom_call.1} parent=1 // pred_fallthru
      _
    %184 = vsyncpa [#allocation3], 1
    %185 = vsyncpa [#allocation4], 1

</llo_original>
